<compile_context>
chip_gen: v5e
topology: v5e:2x2
jax: 0.10.0
libtpu: 0.0.40
codegen_flags: <defaults>
</compile_context>

<pallas_src>
import math

import jax
import jax.numpy as jnp
from jax.experimental import pallas as pl
from jax.experimental.pallas import tpu as pltpu

EPS = 1e-5                    # BatchNorm2d default eps
LANE = 128                    # TPU lane width
MAX_ROWS_PER_STEP = 16 * 1024  # ~16 CIFAR (32x32) images per grid step


def _round_up(x, m):
    return (x + m - 1) // m * m


def _vmem_capacity_bytes():
    """Physical VMEM of the current generation (64 MiB v7x, 128 MiB v5e/v6e)."""
    try:
        cap = getattr(pltpu.get_tpu_info(), "vmem_capacity_bytes", None)
        if cap:
            return int(cap)
    except Exception:
        pass
    return 64 * 1024 * 1024   # conservative (v7x-sized) fallback


def _pick_images_per_step(N, HW, k_pad, cout_p, budget_bytes):
    """Largest divisor of N whose row tile fits the VMEM budget (double-
    buffered pipeline blocks + f32 matmul temporaries), capped at
    MAX_ROWS_PER_STEP and keeping >= 2 grid steps when N >= 2 so the v7x
    megacore split stays balanced."""
    best = 1
    for b in range(1, N + 1):
        if N % b:
            continue
        if N >= 2 and N // b < 2:
            continue
        rows = b * HW
        if rows > MAX_ROWS_PER_STEP:
            continue
        per_step = (2 * (rows * k_pad * 2        # x tile (bf16), double buffered
                         + rows * cout_p * 2     # y tile (bf16), double buffered
                         + k_pad * cout_p * 2    # weights (bf16)
                         + 2 * cout_p * 4)       # stats (f32)
                    + 3 * rows * cout_p * 4)     # f32 matmul result + temps
        if per_step > budget_bytes:
            continue
        best = b
    return best


# ----------------------------------------------------------------------------
# Kernel 1: conv as a single GEMM over the packed-K im2col rows (bf16 MXU,
#           f32 accumulation) + per-tile BatchNorm partial (sum, sum-of-sq).
# ----------------------------------------------------------------------------
def _conv_stats_kernel(x_ref, w_ref, y_ref, stats_ref):
    # x_ref:     (tm, k_pad)    bf16  im2col rows (taps packed into K)
    # w_ref:     (k_pad, cout_p) bf16
    # y_ref:     (tm, cout_p)   bf16  raw conv output (pre-BN), halved HBM
    # stats_ref: (2, cout_p)    f32   per-tile [sum, sum-of-squares]
    y = jnp.dot(x_ref[...], w_ref[...], preferred_element_type=jnp.float32)
    s = jnp.sum(y, axis=0, keepdims=True)        # f32 stats BEFORE the cast
    ss = jnp.sum(y * y, axis=0, keepdims=True)
    stats_ref[...] = jnp.concatenate([s, ss], axis=0)
    y_ref[...] = y.astype(jnp.bfloat16)


# ----------------------------------------------------------------------------
# Kernel 2: fused y*scale + shift -> ReLU sweep; channel un-pad folded into
#           the store so only Cout (not cout_p) columns hit HBM.
# ----------------------------------------------------------------------------
def _make_bn_bias_relu_kernel(cout):
    def kernel(y_ref, ss_ref, o_ref):
        # y_ref: (tm, cout_p) bf16, ss_ref: (2, cout_p) f32, o_ref: (tm, cout) f32
        y = y_ref[...].astype(jnp.float32)
        z = jnp.maximum(y * ss_ref[0:1, :] + ss_ref[1:2, :], 0.0)
        o_ref[...] = z[:, :cout]
    return kernel


# ----------------------------------------------------------------------------
# Wrapper: Conv(in, out, kernel=3x3, stride=1, pad=same, bn=True, relu, bias)
# ----------------------------------------------------------------------------
def conv_bn_relu(x_nchw, weight, bias):
    """x_nchw: (N,Cin,H,W) f32, weight: (Cout,Cin,KH,KW) f32, bias: (Cout,) f32
    -> (N,Cout,H,W) f32."""
    N, Cin, H, W = x_nchw.shape
    Cout, Cin_w, KH, KW = weight.shape
    assert Cin == Cin_w
    ph, pw = KH // 2, KW // 2            # module default: 'same' padding
    HW = H * W
    R = N * HW                           # rows / BatchNorm reduction size
    K = KH * KW * Cin
    k_pad = _round_up(K, LANE)
    cout_p = _round_up(Cout, LANE)

    # ---- layout prep (XLA): NCHW -> NHWC, spatial pad, bf16, K-packed im2col
    x = jnp.transpose(x_nchw, (0, 2, 3, 1)).astype(jnp.bfloat16)   # (N,H,W,Cin)
    x = jnp.pad(x, ((0, 0), (ph, ph), (pw, pw), (0, 0)))
    patches = [x[:, kh:kh + H, kw:kw + W, :]
               for kh in range(KH) for kw in range(KW)]
    x_col = jnp.concatenate(patches, axis=-1).reshape(R, K)
    x_col = jnp.pad(x_col, ((0, 0), (0, k_pad - K)))               # (R, k_pad)

    w = jnp.transpose(weight, (2, 3, 1, 0)).reshape(K, Cout)       # (kh,kw,cin)
    w = jnp.pad(w, ((0, k_pad - K), (0, cout_p - Cout))).astype(jnp.bfloat16)

    # ---- generation-aware tile selection ------------------------------------
    vmem_cap = _vmem_capacity_bytes()
    budget = int(vmem_cap * 0.7)                  # ~45 MB on v7x, ~90 MB v5e/v6e
    b_tile = _pick_images_per_step(N, HW, k_pad, cout_p, budget)
    tm = b_tile * HW
    n_tiles = R // tm
    cparams = pltpu.CompilerParams(
        dimension_semantics=("parallel",),        # megacore split on v7x
        vmem_limit_bytes=min(int(vmem_cap * 0.9), 128 * 1024 * 1024),
    )

    # ---- pass 1: conv GEMM (taps packed into K) + per-tile BN partials ------
    conv_cost = pl.CostEstimate(
        flops=2 * R * k_pad * cout_p,
        transcendentals=0,
        bytes_accessed=(R * k_pad * 2 + k_pad * cout_p * 2
                        + R * cout_p * 2 + n_tiles * 2 * cout_p * 4),
    )
    y, part = pl.pallas_call(
        _conv_stats_kernel,
        grid=(n_tiles,),
        in_specs=[
            pl.BlockSpec((tm, k_pad), lambda i: (i, 0)),
            pl.BlockSpec((k_pad, cout_p), lambda i: (0, 0)),
        ],
        out_specs=[
            pl.BlockSpec((tm, cout_p), lambda i: (i, 0)),
            pl.BlockSpec((None, 2, cout_p), lambda i: (i, 0, 0)),
        ],
        out_shape=[
            jax.ShapeDtypeStruct((R, cout_p), jnp.bfloat16),
            jax.ShapeDtypeStruct((n_tiles, 2, cout_p), jnp.float32),
        ],
        compiler_params=cparams,
        cost_estimate=conv_cost,
    )(x_col, w)

    # ---- tiny cross-tile combine; per-channel scale/shift precomputed once --
    stats = jnp.sum(part, axis=0)                           # (2, cout_p) f32
    inv_m = 1.0 / float(R)
    mean = stats[0] * inv_m
    var = jnp.maximum(stats[1] * inv_m - mean * mean, 0.0)  # clamp cancellation
    scale = jax.lax.rsqrt(var + EPS)
    b_pad = jnp.pad(bias.astype(jnp.float32), (0, cout_p - Cout))
    shift = b_pad - mean * scale
    scale_shift = jnp.stack([scale, shift]).astype(jnp.float32)   # (2, cout_p)

    # ---- pass 2: fused scale/shift + ReLU, un-padded channel output ---------
    bn_cost = pl.CostEstimate(
        flops=3 * R * cout_p,
        transcendentals=0,
        bytes_accessed=R * cout_p * 2 + 2 * cout_p * 4 + R * Cout * 4,
    )
    out = pl.pallas_call(
        _make_bn_bias_relu_kernel(Cout),
        grid=(n_tiles,),
        in_specs=[
            pl.BlockSpec((tm, cout_p), lambda i: (i, 0)),
            pl.BlockSpec((2, cout_p), lambda i: (0, 0)),
        ],
        out_specs=pl.BlockSpec((tm, Cout), lambda i: (i, 0)),
        out_shape=jax.ShapeDtypeStruct((R, Cout), jnp.float32),
        compiler_params=cparams,
        cost_estimate=bn_cost,
    )(y, scale_shift)

    # Cheap NHWC (unpadded) -> NCHW transpose on the small final tensor.
    out = out.reshape(N, H, W, Cout)
    return jnp.transpose(out, (0, 3, 1, 2))


# ----------------------------------------------------------------------------
# Parameter init matching Conv.reset_parameters: uniform(-stdv, stdv),
# stdv = 1/sqrt(in_channels * KH * KW), for both weight and bias.
# ----------------------------------------------------------------------------
def init_conv_params(key, in_channels, out_channels, kernel_size=(3, 3)):
    kh, kw = kernel_size
    stdv = 1.0 / math.sqrt(in_channels * kh * kw)
    k_w, k_b = jax.random.split(key)
    weight = jax.random.uniform(k_w, (out_channels, in_channels, kh, kw),
                                jnp.float32, -stdv, stdv)
    bias = jax.random.uniform(k_b, (out_channels,), jnp.float32, -stdv, stdv)
    return weight, bias


# ----------------------------------------------------------------------------
# Pure-JAX reference of the module forward (for a sanity check).
# ----------------------------------------------------------------------------
def reference_forward(x, weight, bias):
    KH, KW = weight.shape[2], weight.shape[3]
    ph, pw = KH // 2, KW // 2
    y = jax.lax.conv_general_dilated(
        x, weight, window_strides=(1, 1),
        padding=((ph, ph), (pw, pw)),
        dimension_numbers=("NCHW", "OIHW", "NCHW"),
        precision=jax.lax.Precision.HIGHEST)
    mean = jnp.mean(y, axis=(0, 2, 3), keepdims=True)
    var = jnp.mean((y - mean) ** 2, axis=(0, 2, 3), keepdims=True)   # biased
    y = (y - mean) * jax.lax.rsqrt(var + EPS)
    y = y + bias[None, :, None, None]
    return jnp.maximum(y, 0.0)


if __name__ == "__main__":
    key = jax.random.PRNGKey(0)
    k_x, k_p = jax.random.split(key)

    N, Cin, Cout, H, W = 2, 8, 16, 16, 16
    x = jax.random.normal(k_x, (N, Cin, H, W), dtype=jnp.float32)
    weight, bias = init_conv_params(k_p, Cin, Cout)

    out = jax.jit(conv_bn_relu)(x, weight, bias)
    out = jax.block_until_ready(out)
    assert out.shape == (N, Cout, H, W)

    ref = reference_forward(x, weight, bias)
    err = float(jnp.max(jnp.abs(out - ref)))
    assert err < 0.1, f"max abs error vs reference too large: {err}"

    print("KERNEL_OK")
</pallas_src>

<mosaic_0001>
module attributes {stable_mosaic.version = 11 : i64} {
  func.func @_conv_stats_kernel(%arg0: i32, %arg1: memref<256x128xbf16, #tpu.memory_space<vmem>>, %arg2: memref<128x128xbf16, #tpu.memory_space<vmem>>, %arg3: memref<256x128xbf16, #tpu.memory_space<vmem>>, %arg4: memref<1x2x128xf32, #tpu.memory_space<vmem>>) attributes {dimension_semantics = [#tpu.dimension_semantics<parallel>], iteration_bounds = array<i64: 2>, scalar_prefetch = 0 : i64, scratch_operands = 0 : i64, tpu.core_type = #tpu.core_type<tc>, window_params = [{transform_indices = @transform_0, window_bounds = array<i64: 256, 128>}, {pipeline_mode = #tpu.pipeline_mode<synchronous>, transform_indices = @transform_1, window_bounds = array<i64: 128, 128>}, {transform_indices = @transform_2, window_bounds = array<i64: 256, 128>}, {transform_indices = @transform_3, window_bounds = array<i64: 1, 2, 128>}]} {
    %c0 = arith.constant 0 : index
    %c0_0 = arith.constant 0 : index
    %0 = vector.load %arg1[%c0, %c0_0] : memref<256x128xbf16, #tpu.memory_space<vmem>>, vector<256x128xbf16>
    %c0_1 = arith.constant 0 : index
    %c0_2 = arith.constant 0 : index
    %1 = vector.load %arg2[%c0_1, %c0_2] : memref<128x128xbf16, #tpu.memory_space<vmem>>, vector<128x128xbf16>
    %cst = arith.constant dense<0.000000e+00> : vector<256x128xf32>
    %2 = tpu.matmul %0, %1, %cst {dimension_numbers = #tpu.dot_dimension_numbers<[1], [0], [0], [1], [0, 0, 1, 1], [], []>} : vector<256x128xbf16>, vector<128x128xbf16>, vector<256x128xf32> -> vector<256x128xf32>
    %cst_3 = arith.constant dense<0.000000e+00> : vector<128xf32>
    %3 = vector.multi_reduction <add>, %2, %cst_3 [0] : vector<256x128xf32> to vector<128xf32>
    %4 = vector.shape_cast %3 : vector<128xf32> to vector<1x128xf32>
    %5 = arith.mulf %2, %2 : vector<256x128xf32>
    %cst_4 = arith.constant dense<0.000000e+00> : vector<128xf32>
    %6 = vector.multi_reduction <add>, %5, %cst_4 [0] : vector<256x128xf32> to vector<128xf32>
    %7 = vector.shape_cast %6 : vector<128xf32> to vector<1x128xf32>
    %8 = tpu.concatenate %4, %7 in 0 : vector<1x128xf32>, vector<1x128xf32> -> vector<2x128xf32>
    %c0_5 = arith.constant 0 : index
    %c0_6 = arith.constant 0 : index
    %c0_7 = arith.constant 0 : index
    %9 = vector.load %arg4[%c0_5, %c0_6, %c0_7] : memref<1x2x128xf32, #tpu.memory_space<vmem>>, vector<1x2x128xf32>
    %10 = vector.shape_cast %9 : vector<1x2x128xf32> to vector<2x128xf32>
    %11 = vector.shape_cast %8 : vector<2x128xf32> to vector<1x2x128xf32>
    tpu.vector_store %arg4[%c0_5, %c0_6, %c0_7], %11 {strides = array<i32>} : memref<1x2x128xf32, #tpu.memory_space<vmem>>, vector<1x2x128xf32>,
    %12 = arith.truncf %2 : vector<256x128xf32> to vector<256x128xbf16>
    %c0_8 = arith.constant 0 : index
    %c0_9 = arith.constant 0 : index
    %13 = vector.load %arg3[%c0_8, %c0_9] : memref<256x128xbf16, #tpu.memory_space<vmem>>, vector<256x128xbf16>
    tpu.vector_store %arg3[%c0_8, %c0_9], %12 {strides = array<i32>} : memref<256x128xbf16, #tpu.memory_space<vmem>>, vector<256x128xbf16>,
    return
  }
  func.func @transform_0(%arg0: i32) -> (i32, i32) {
    %c0_i32 = arith.constant 0 : i32
    %c0_i32_0 = arith.constant 0 : i32
    return %arg0, %c0_i32 : i32, i32
  }
  func.func @transform_1(%arg0: i32) -> (i32, i32) {
    %c0_i32 = arith.constant 0 : i32
    %c0_i32_0 = arith.constant 0 : i32
    %c0_i32_1 = arith.constant 0 : i32
    return %c0_i32, %c0_i32_0 : i32, i32
  }
  func.func @transform_2(%arg0: i32) -> (i32, i32) {
    %c0_i32 = arith.constant 0 : i32
    %c0_i32_0 = arith.constant 0 : i32
    return %arg0, %c0_i32 : i32, i32
  }
  func.func @transform_3(%arg0: i32) -> (i32, i32, i32) {
    %c0_i32 = arith.constant 0 : i32
    %c0_i32_0 = arith.constant 0 : i32
    %c0_i32_1 = arith.constant 0 : i32
    return %arg0, %c0_i32, %c0_i32_0 : i32, i32, i32
  }
}

module attributes {stable_mosaic.version = 11 : i64} {
  func.func @kernel(%arg0: i32, %arg1: memref<256x128xbf16, #tpu.memory_space<vmem>>, %arg2: memref<2x128xf32, #tpu.memory_space<vmem>>, %arg3: memref<256x16xf32, #tpu.memory_space<vmem>>) attributes {dimension_semantics = [#tpu.dimension_semantics<parallel>], iteration_bounds = array<i64: 2>, scalar_prefetch = 0 : i64, scratch_operands = 0 : i64, tpu.core_type = #tpu.core_type<tc>, window_params = [{transform_indices = @transform_0, window_bounds = array<i64: 256, 128>}, {pipeline_mode = #tpu.pipeline_mode<synchronous>, transform_indices = @transform_1, window_bounds = array<i64: 2, 128>}, {transform_indices = @transform_2, window_bounds = array<i64: 256, 16>}]} {
    %c0 = arith.constant 0 : index
    %c0_0 = arith.constant 0 : index
    %0 = vector.load %arg1[%c0, %c0_0] : memref<256x128xbf16, #tpu.memory_space<vmem>>, vector<256x128xbf16>
    %1 = arith.extf %0 : vector<256x128xbf16> to vector<256x128xf32>
    %c0_1 = arith.constant 0 : index
    %c0_2 = arith.constant 0 : index
    %2 = vector.load %arg2[%c0_1, %c0_2] : memref<2x128xf32, #tpu.memory_space<vmem>>, vector<1x128xf32>
    %3 = vector.broadcast %2 : vector<1x128xf32> to vector<256x128xf32>
    %4 = arith.mulf %1, %3 : vector<256x128xf32>
    %c1 = arith.constant 1 : index
    %c0_3 = arith.constant 0 : index
    %5 = vector.load %arg2[%c1, %c0_3] : memref<2x128xf32, #tpu.memory_space<vmem>>, vector<1x128xf32>
    %6 = vector.broadcast %5 : vector<1x128xf32> to vector<256x128xf32>
    %7 = arith.addf %4, %6 : vector<256x128xf32>
    %cst = arith.constant 0.000000e+00 : f32
    %8 = vector.broadcast %cst : f32 to vector<256x128xf32>
    %9 = arith.maximumf %7, %8 : vector<256x128xf32>
    %10 = vector.extract_strided_slice %9 {offsets = [0, 0], sizes = [256, 16], strides = [1, 1]} : vector<256x128xf32> to vector<256x16xf32>
    %c0_4 = arith.constant 0 : index
    %c0_5 = arith.constant 0 : index
    %11 = vector.load %arg3[%c0_4, %c0_5] : memref<256x16xf32, #tpu.memory_space<vmem>>, vector<256x16xf32>
    tpu.vector_store %arg3[%c0_4, %c0_5], %10 {strides = array<i32>} : memref<256x16xf32, #tpu.memory_space<vmem>>, vector<256x16xf32>,
    return
  }
  func.func @transform_0(%arg0: i32) -> (i32, i32) {
    %c0_i32 = arith.constant 0 : i32
    %c0_i32_0 = arith.constant 0 : i32
    return %arg0, %c0_i32 : i32, i32
  }
  func.func @transform_1(%arg0: i32) -> (i32, i32) {
    %c0_i32 = arith.constant 0 : i32
    %c0_i32_0 = arith.constant 0 : i32
    %c0_i32_1 = arith.constant 0 : i32
    return %c0_i32, %c0_i32_0 : i32, i32
  }
  func.func @transform_2(%arg0: i32) -> (i32, i32) {
    %c0_i32 = arith.constant 0 : i32
    %c0_i32_0 = arith.constant 0 : i32
    return %arg0, %c0_i32 : i32, i32
  }
}

</mosaic_0001>

<llo_original>
// kernel: conv_bn_relu.3
$region0: #{conv_bn_relu.3}
  #allocation0 [shape = 'u32[]', space=smem, size = 0x4, offset = 0x4, fixed_abs, tag = 'smem constant byte address 0x4 - core index']
  #allocation1 [shape = 'u32[72,128]{1,0:T(1,128)}', space=vmem, size = 0x9000, scoped, tag = 'internal scratch']
  %s0 = inlined_call_operand.vmem [shape: bf16[512,128], index: 0, kind: input, shape index: {}]
  %s1 = inlined_call_operand.vmem [shape: f32[2,128], index: 1, kind: input, shape index: {}]
  %s2 = inlined_call_operand.vmem [shape: f32[512,16], index: 2, kind: output, shape index: {}]
  %s3 = sld [smem:[#allocation0]]
  $region41: #{conv_bn_relu.3} parent=0
    _
  %s5 = ssub.s32 1, %s3
  %s6 = scalar_select 0, %s5, %s3
  loop: start=0, step=1, limit=4
  $region2: #{conv_bn_relu.3} parent=0 // loop_pre_header
    _
  $region3: #{conv_bn_relu.3} parent=0 // loop_header
    %s8 = sphi 0, %s12
    %p9 = scmp.ge.s32.totalorder %s8, 4
    %s18 = sphi 0, %s20
    %s21 = sphi 0, %s18
    %s22 = sphi 0, %s21
    %s38 = sphi 0, %s22
    %s42 = sphi 0, %s42
    %s44 = sphi 0, %s42
    %s45 = sphi 0, %s44
    %s59 = sphi 0, %s45
    %s65 = sphi 0, %s67
    %s68 = sphi 0, %s65
    %s69 = sphi 0, %s68
    %s85 = sphi 0, %s69
  $region4: #{conv_bn_relu.3} parent=0 // loop_header_branch
    %11 = sbr.rel (%p9) target = $region8
  $region5: #{conv_bn_relu.3} parent=0 // loop_body
    %s13 = ssub.s32 %s8, 1
    %s14 = ssub.s32 %s8, 2
    %s15 = sadd.s32 %s8, 1
    %s16 = ssub.s32 %s8, %s15
    %p17 = scmp.eq.s32.totalorder %s16, 0
    %s19 = sadd.s32 %s18, 1
    %s20 = scalar_select %p17, %s18, %s19
    %p23 = pneg %p17
    %p24 = scmp.eq.s32.totalorder %s8, 1
    %p25 = por %p23, %p24
    %p26 = scmp.ne.s32.totalorder %s18, %s21
    %p27 = scmp.eq.s32.totalorder %s8, 0
    %p28 = por %p26, %p27
    %p29 = scmp.ne.s32.totalorder %s18, %s21
    %p30 = scmp.eq.s32.totalorder %s13, 1
    %p31 = por %p29, %p30
    %p32 = scmp.ne.s32.totalorder %s21, %s22
    %p33 = scmp.eq.s32.totalorder %s13, 0
    %p34 = por %p32, %p33
    %p35 = scmp.ne.s32.totalorder %s21, %s22
    %p36 = scmp.eq.s32.totalorder %s14, 1
    %p37 = por %p35, %p36
    %p39 = scmp.ne.s32.totalorder %s22, %s38
    %p40 = scmp.eq.s32.totalorder %s14, 0
    %p41 = por %p39, %p40
    %s43 = sadd.s32 %s42, 1
    %p46 = scmp.eq.s32.totalorder %s8, 1
    %p47 = scmp.ne.s32.totalorder %s42, %s44
    %p48 = scmp.eq.s32.totalorder %s8, 0
    %p49 = por %p47, %p48
    %p50 = scmp.ne.s32.totalorder %s42, %s44
    %p51 = scmp.eq.s32.totalorder %s13, 1
    %p52 = por %p50, %p51
    %p53 = scmp.ne.s32.totalorder %s44, %s45
    %p54 = scmp.eq.s32.totalorder %s13, 0
    %p55 = por %p53, %p54
    %p56 = scmp.ne.s32.totalorder %s44, %s45
    %p57 = scmp.eq.s32.totalorder %s14, 1
    %p58 = por %p56, %p57
    %p60 = scmp.ne.s32.totalorder %s45, %s59
    %p61 = scmp.eq.s32.totalorder %s14, 0
    %p62 = por %p60, %p61
    %s63 = ssub.s32 %s8, %s15
    %p64 = scmp.eq.s32.totalorder %s63, 0
    %s66 = sadd.s32 %s65, 1
    %s67 = scalar_select %p64, %s65, %s66
    %p70 = pneg %p64
    %p71 = scmp.eq.s32.totalorder %s8, 1
    %p72 = por %p70, %p71
    %p73 = scmp.ne.s32.totalorder %s65, %s68
    %p74 = scmp.eq.s32.totalorder %s8, 0
    %p75 = por %p73, %p74
    %p76 = scmp.ne.s32.totalorder %s65, %s68
    %p77 = scmp.eq.s32.totalorder %s13, 1
    %p78 = por %p76, %p77
    %p79 = scmp.ne.s32.totalorder %s68, %s69
    %p80 = scmp.eq.s32.totalorder %s13, 0
    %p81 = por %p79, %p80
    %p82 = scmp.ne.s32.totalorder %s68, %s69
    %p83 = scmp.eq.s32.totalorder %s14, 1
    %p84 = por %p82, %p83
    %p86 = scmp.ne.s32.totalorder %s69, %s85
    %p87 = scmp.eq.s32.totalorder %s14, 0
    %p88 = por %p86, %p87
    %p89 = scmp.le.s32.totalorder 1, %s8
    %p90 = scmp.lt.s32.totalorder %s8, 3
    %p91 = pnand %p89, %p90
    %p92 = pneg %p91
    // Predicated region
    $region9: #{conv_bn_relu.3} parent=5 // pred_check
      _
    $region10: #{conv_bn_relu.3} parent=5 // pred_check_branch
      %94 = sbr.rel (%p91) target = $region12
    $region11: #{conv_bn_relu.3} parent=5 // pred_region
      %s95 = ssub.s32 %s8, 1
      // Predicated region
      $region13: #{conv_bn_relu.3} parent=11 // pred_check
        %p96 = pneg %p55
      $region14: #{conv_bn_relu.3} parent=11 // pred_check_branch
        %98 = sbr.rel (%p96) target = $region16
      $region15: #{conv_bn_relu.3} parent=11 // pred_region
        _
      $region16: #{conv_bn_relu.3} parent=11 // pred_fallthru
        _
    $region12: #{conv_bn_relu.3} parent=5 // pred_fallthru
      _
    %p99 = scmp.lt.s32.totalorder %s8, 2
    // Predicated region
    $region17: #{conv_bn_relu.3} parent=5 // pred_check
      %p100 = pneg %p99
    $region18: #{conv_bn_relu.3} parent=5 // pred_check_branch
      %102 = sbr.rel (%p100) target = $region20
    $region19: #{conv_bn_relu.3} parent=5 // pred_region
      // Predicated region
      $region21: #{conv_bn_relu.3} parent=19 // pred_check
        %p103 = pneg %p28
      $region22: #{conv_bn_relu.3} parent=19 // pred_check_branch
        %105 = sbr.rel (%p103) target = $region24
      $region23: #{conv_bn_relu.3} parent=19 // pred_region
        %s106 = smul.u32 32, %s8
        %p107 = scmp.lt.s32.totalorder %s106, 63
        %s108 = scalar_select %p107, %s106, 63
        %s109 = smul.addr %s108, 4
        %s110 = scalar_lea.vmem %s0, %s109
        %s111 = smul.u32 32, %s8
      $region24: #{conv_bn_relu.3} parent=19 // pred_fallthru
        _
    $region20: #{conv_bn_relu.3} parent=5 // pred_fallthru
      _
    %p112 = scmp.le.s32.totalorder 1, %s8
    %p113 = scmp.lt.s32.totalorder %s8, 3
    %p114 = pnand %p112, %p113
    %p115 = pneg %p114
    // Predicated region
    $region25: #{conv_bn_relu.3} parent=5 // pred_check
      _
    $region26: #{conv_bn_relu.3} parent=5 // pred_check_branch
      %117 = sbr.rel (%p114) target = $region28
    $region27: #{conv_bn_relu.3} parent=5 // pred_region
      %s118 = ssub.s32 %s8, 1
      %s119 = smul.u32 32, %s13
      %p120 = scmp.lt.s32.totalorder %s119, 63
      %s121 = scalar_select %p120, %s119, 63
      %s122 = smul.addr %s121, 4
      %s123 = scalar_lea.vmem %s0, %s122
      %p124 = pneg %p34
      %p125 = pneg %p31
      %p126 = pneg %p55
      %p127 = pneg %p52
      %p128 = pneg %p81
      %p129 = pneg %p78
      %s130 = smul.u32 32, %s13
      %p131 = scmp.lt.s32.totalorder %s130, 63
      %s132 = scalar_select %p131, %s130, 63
      %s133 = smul.addr %s132, 8
      %s134 = scalar_lea.vmem %s2, %s133
      %s135 = smul.u32 32, %s13
      %p136 = scmp.lt.s32.totalorder %s135, 63
      %s137 = scalar_select %p136, %s135, 63
      %s138 = smul.addr %s137, 4
      %s139 = scalar_lea.vmem %s0, %s138
      %s140 = smul.u32 32, %s13
      %s141 = smul.u32 32, %s13
      %p142 = scmp.lt.s32.totalorder %s141, 63
      %s143 = scalar_select %p142, %s141, 63
      %s144 = smul.addr %s143, 8
      %s145 = scalar_lea.vmem %s2, %s144
      %s146 = smul.u32 32, %s13
      %v147 = vld [vmem:[%s139] sm:$0xf]
      %v148 = vld [vmem:[%s139 + $0x4] sm:$0xf]
      %v149 = vld [vmem:[%s139 + $0x8] sm:$0xf]
      %v150 = vld [vmem:[%s139 + $0xc] sm:$0xf]
      %v151 = vld [vmem:[%s139 + $0x10] sm:$0xf]
      %v152 = vld [vmem:[%s139 + $0x14] sm:$0xf]
      %v153 = vld [vmem:[%s139 + $0x18] sm:$0xf]
      %v154 = vld [vmem:[%s139 + $0x1c] sm:$0xf]
      %v155 = vld [vmem:[%s139 + $0x20] sm:$0xf]
      %v156 = vld [vmem:[%s139 + $0x24] sm:$0xf]
      %v157 = vld [vmem:[%s139 + $0x28] sm:$0xf]
      %v158 = vld [vmem:[%s139 + $0x2c] sm:$0xf]
      %v159 = vld [vmem:[%s139 + $0x30] sm:$0xf]
      %v160 = vld [vmem:[%s139 + $0x34] sm:$0xf]
      %v161 = vld [vmem:[%s139 + $0x38] sm:$0xf]
      %v162 = vld [vmem:[%s139 + $0x3c] sm:$0xf]
      %v163 = vld [vmem:[%s139 + $0x40] sm:$0xf]
      %v164 = vld [vmem:[%s139 + $0x44] sm:$0xf]
      %v165 = vld [vmem:[%s139 + $0x48] sm:$0xf]
      %v166 = vld [vmem:[%s139 + $0x4c] sm:$0xf]
      %v167 = vld [vmem:[%s139 + $0x50] sm:$0xf]
      %v168 = vld [vmem:[%s139 + $0x54] sm:$0xf]
      %v169 = vld [vmem:[%s139 + $0x58] sm:$0xf]
      %v170 = vld [vmem:[%s139 + $0x5c] sm:$0xf]
      %v171 = vld [vmem:[%s139 + $0x60] sm:$0xf]
      %v172 = vld [vmem:[%s139 + $0x64] sm:$0xf]
      %v173 = vld [vmem:[%s139 + $0x68] sm:$0xf]
      %v174 = vld [vmem:[%s139 + $0x6c] sm:$0xf]
      %v175 = vld [vmem:[%s139 + $0x70] sm:$0xf]
      %v176 = vld [vmem:[%s139 + $0x74] sm:$0xf]
      %v177 = vld [vmem:[%s139 + $0x78] sm:$0xf]
      %v178 = vld [vmem:[%s139 + $0x7c] sm:$0xf]
      %v179 = vunpack.c.l.bf16 %v147
      %v180 = vunpack.c.l.bf16 %v148
      %v181 = vunpack.c.l.bf16 %v149
      %v182 = vunpack.c.l.bf16 %v150
      %v183 = vunpack.c.l.bf16 %v151
      %v184 = vunpack.c.l.bf16 %v152
      %v185 = vunpack.c.l.bf16 %v153
      %v186 = vunpack.c.l.bf16 %v154
      %v187 = vunpack.c.l.bf16 %v155
      %v188 = vunpack.c.l.bf16 %v156
      %v189 = vunpack.c.l.bf16 %v157
      %v190 = vunpack.c.l.bf16 %v158
      %v191 = vunpack.c.l.bf16 %v159
      %v192 = vunpack.c.l.bf16 %v160
      %v193 = vunpack.c.l.bf16 %v161
      %v194 = vunpack.c.l.bf16 %v162
      %v195 = vunpack.c.l.bf16 %v163
      %v196 = vunpack.c.l.bf16 %v164
      %v197 = vunpack.c.l.bf16 %v165
      %v198 = vunpack.c.l.bf16 %v166
      %v199 = vunpack.c.l.bf16 %v167
      %v200 = vunpack.c.l.bf16 %v168
      %v201 = vunpack.c.l.bf16 %v169
      %v202 = vunpack.c.l.bf16 %v170
      %v203 = vunpack.c.l.bf16 %v171
      %v204 = vunpack.c.l.bf16 %v172
      %v205 = vunpack.c.l.bf16 %v173
      %v206 = vunpack.c.l.bf16 %v174
      %v207 = vunpack.c.l.bf16 %v175
      %v208 = vunpack.c.l.bf16 %v176
      %v209 = vunpack.c.l.bf16 %v177
      %v210 = vunpack.c.l.bf16 %v178
      %v211 = vld [vmem:[%s1] sm:$0x1]
      %v212 = vperm.slane %v211, 0
      %v213 = vmul.f32 %v179, %v212
      %v214 = vmul.f32 %v180, %v212
      %v215 = vmul.f32 %v181, %v212
      %v216 = vmul.f32 %v182, %v212
      %v217 = vmul.f32 %v183, %v212
      %v218 = vmul.f32 %v184, %v212
      %v219 = vmul.f32 %v185, %v212
      %v220 = vmul.f32 %v186, %v212
      %v221 = vmul.f32 %v187, %v212
      %v222 = vmul.f32 %v188, %v212
      %v223 = vmul.f32 %v189, %v212
      %v224 = vmul.f32 %v190, %v212
      %v225 = vmul.f32 %v191, %v212
      %v226 = vmul.f32 %v192, %v212
      %v227 = vmul.f32 %v193, %v212
      %v228 = vmul.f32 %v194, %v212
      %v229 = vmul.f32 %v195, %v212
      %v230 = vmul.f32 %v196, %v212
      %v231 = vmul.f32 %v197, %v212
      %v232 = vmul.f32 %v198, %v212
      %v233 = vmul.f32 %v199, %v212
      %v234 = vmul.f32 %v200, %v212
      %v235 = vmul.f32 %v201, %v212
      %v236 = vmul.f32 %v202, %v212
      %v237 = vmul.f32 %v203, %v212
      %v238 = vmul.f32 %v204, %v212
      %v239 = vmul.f32 %v205, %v212
      %v240 = vmul.f32 %v206, %v212
      %v241 = vmul.f32 %v207, %v212
      %v242 = vmul.f32 %v208, %v212
      %v243 = vmul.f32 %v209, %v212
      %v244 = vmul.f32 %v210, %v212
      %v245 = vld [vmem:[%s1 + $0x1] sm:$0x1]
      %v246 = vperm.slane %v245, 0
      %v247 = vadd.f32 %v213, %v246
      %v248 = vadd.f32 %v214, %v246
      %v249 = vadd.f32 %v215, %v246
      %v250 = vadd.f32 %v216, %v246
      %v251 = vadd.f32 %v217, %v246
      %v252 = vadd.f32 %v218, %v246
      %v253 = vadd.f32 %v219, %v246
      %v254 = vadd.f32 %v220, %v246
      %v255 = vadd.f32 %v221, %v246
      %v256 = vadd.f32 %v222, %v246
      %v257 = vadd.f32 %v223, %v246
      %v258 = vadd.f32 %v224, %v246
      %v259 = vadd.f32 %v225, %v246
      %v260 = vadd.f32 %v226, %v246
      %v261 = vadd.f32 %v227, %v246
      %v262 = vadd.f32 %v228, %v246
      %v263 = vadd.f32 %v229, %v246
      %v264 = vadd.f32 %v230, %v246
      %v265 = vadd.f32 %v231, %v246
      %v266 = vadd.f32 %v232, %v246
      %v267 = vadd.f32 %v233, %v246
      %v268 = vadd.f32 %v234, %v246
      %v269 = vadd.f32 %v235, %v246
      %v270 = vadd.f32 %v236, %v246
      %v271 = vadd.f32 %v237, %v246
      %v272 = vadd.f32 %v238, %v246
      %v273 = vadd.f32 %v239, %v246
      %v274 = vadd.f32 %v240, %v246
      %v275 = vadd.f32 %v241, %v246
      %v276 = vadd.f32 %v242, %v246
      %v277 = vadd.f32 %v243, %v246
      %v278 = vadd.f32 %v244, %v246
      %v279 = vmax.f32 %v247, 0.0
      %v280 = vmax.f32 %v248, 0.0
      %v281 = vmax.f32 %v249, 0.0
      %v282 = vmax.f32 %v250, 0.0
      %v283 = vmax.f32 %v251, 0.0
      %v284 = vmax.f32 %v252, 0.0
      %v285 = vmax.f32 %v253, 0.0
      %v286 = vmax.f32 %v254, 0.0
      %v287 = vmax.f32 %v255, 0.0
      %v288 = vmax.f32 %v256, 0.0
      %v289 = vmax.f32 %v257, 0.0
      %v290 = vmax.f32 %v258, 0.0
      %v291 = vmax.f32 %v259, 0.0
      %v292 = vmax.f32 %v260, 0.0
      %v293 = vmax.f32 %v261, 0.0
      %v294 = vmax.f32 %v262, 0.0
      %v295 = vmax.f32 %v263, 0.0
      %v296 = vmax.f32 %v264, 0.0
      %v297 = vmax.f32 %v265, 0.0
      %v298 = vmax.f32 %v266, 0.0
      %v299 = vmax.f32 %v267, 0.0
      %v300 = vmax.f32 %v268, 0.0
      %v301 = vmax.f32 %v269, 0.0
      %v302 = vmax.f32 %v270, 0.0
      %v303 = vmax.f32 %v271, 0.0
      %v304 = vmax.f32 %v272, 0.0
      %v305 = vmax.f32 %v273, 0.0
      %v306 = vmax.f32 %v274, 0.0
      %v307 = vmax.f32 %v275, 0.0
      %v308 = vmax.f32 %v276, 0.0
      %v309 = vmax.f32 %v277, 0.0
      %v310 = vmax.f32 %v278, 0.0
      %vm311 = vcmask 130048
      %312 = vst.msk [vmem:[%s145] sm:$0xff] %vm311, %v279
      %313 = vst.msk [vmem:[%s145 + $0x8] sm:$0xff] %vm311, %v280
      %314 = vst.msk [vmem:[%s145 + $0x10] sm:$0xff] %vm311, %v281
      %315 = vst.msk [vmem:[%s145 + $0x18] sm:$0xff] %vm311, %v282
      %316 = vst.msk [vmem:[%s145 + $0x20] sm:$0xff] %vm311, %v283
      %317 = vst.msk [vmem:[%s145 + $0x28] sm:$0xff] %vm311, %v284
      %318 = vst.msk [vmem:[%s145 + $0x30] sm:$0xff] %vm311, %v285
      %319 = vst.msk [vmem:[%s145 + $0x38] sm:$0xff] %vm311, %v286
      %320 = vst.msk [vmem:[%s145 + $0x40] sm:$0xff] %vm311, %v287
      %321 = vst.msk [vmem:[%s145 + $0x48] sm:$0xff] %vm311, %v288
      %322 = vst.msk [vmem:[%s145 + $0x50] sm:$0xff] %vm311, %v289
      %323 = vst.msk [vmem:[%s145 + $0x58] sm:$0xff] %vm311, %v290
      %324 = vst.msk [vmem:[%s145 + $0x60] sm:$0xff] %vm311, %v291
      %325 = vst.msk [vmem:[%s145 + $0x68] sm:$0xff] %vm311, %v292
      %326 = vst.msk [vmem:[%s145 + $0x70] sm:$0xff] %vm311, %v293
      %327 = vst.msk [vmem:[%s145 + $0x78] sm:$0xff] %vm311, %v294
      %328 = vst.msk [vmem:[%s145 + $0x80] sm:$0xff] %vm311, %v295
      %329 = vst.msk [vmem:[%s145 + $0x88] sm:$0xff] %vm311, %v296
      %330 = vst.msk [vmem:[%s145 + $0x90] sm:$0xff] %vm311, %v297
      %331 = vst.msk [vmem:[%s145 + $0x98] sm:$0xff] %vm311, %v298
      %332 = vst.msk [vmem:[%s145 + $0xa0] sm:$0xff] %vm311, %v299
      %333 = vst.msk [vmem:[%s145 + $0xa8] sm:$0xff] %vm311, %v300
      %334 = vst.msk [vmem:[%s145 + $0xb0] sm:$0xff] %vm311, %v301
      %335 = vst.msk [vmem:[%s145 + $0xb8] sm:$0xff] %vm311, %v302
      %336 = vst.msk [vmem:[%s145 + $0xc0] sm:$0xff] %vm311, %v303
      %337 = vst.msk [vmem:[%s145 + $0xc8] sm:$0xff] %vm311, %v304
      %338 = vst.msk [vmem:[%s145 + $0xd0] sm:$0xff] %vm311, %v305
      %339 = vst.msk [vmem:[%s145 + $0xd8] sm:$0xff] %vm311, %v306
      %340 = vst.msk [vmem:[%s145 + $0xe0] sm:$0xff] %vm311, %v307
      %341 = vst.msk [vmem:[%s145 + $0xe8] sm:$0xff] %vm311, %v308
      %342 = vst.msk [vmem:[%s145 + $0xf0] sm:$0xff] %vm311, %v309
      %343 = vst.msk [vmem:[%s145 + $0xf8] sm:$0xff] %vm311, %v310
      %s344 = smul.u32 32, %s13
      %p345 = scmp.lt.s32.totalorder %s344, 63
      %s346 = scalar_select %p345, %s344, 63
      %s347 = smul.addr %s346, 8
      %s348 = scalar_lea.vmem %s2, %s347
      // Predicated region
      $region29: #{conv_bn_relu.3} parent=27 // pred_check
        %p349 = pneg %p78
      $region30: #{conv_bn_relu.3} parent=27 // pred_check_branch
        %351 = sbr.rel (%p349) target = $region32
      $region31: #{conv_bn_relu.3} parent=27 // pred_region
        %s352 = smul.u32 32, %s13
      $region32: #{conv_bn_relu.3} parent=27 // pred_fallthru
        _
    $region28: #{conv_bn_relu.3} parent=5 // pred_fallthru
      _
    %p353 = scmp.le.s32.totalorder 2, %s8
    // Predicated region
    $region33: #{conv_bn_relu.3} parent=5 // pred_check
      %p354 = pneg %p353
    $region34: #{conv_bn_relu.3} parent=5 // pred_check_branch
      %356 = sbr.rel (%p354) target = $region36
    $region35: #{conv_bn_relu.3} parent=5 // pred_region
      %s357 = ssub.s32 %s8, 2
      // Predicated region
      $region37: #{conv_bn_relu.3} parent=35 // pred_check
        %p358 = pneg %p84
      $region38: #{conv_bn_relu.3} parent=35 // pred_check_branch
        %360 = sbr.rel (%p358) target = $region40
      $region39: #{conv_bn_relu.3} parent=35 // pred_region
        %s361 = smul.u32 32, %s14
        %p362 = scmp.lt.s32.totalorder %s361, 63
        %s363 = scalar_select %p362, %s361, 63
        %s364 = smul.addr %s363, 8
        %s365 = scalar_lea.vmem %s2, %s364
      $region40: #{conv_bn_relu.3} parent=35 // pred_fallthru
        _
    $region36: #{conv_bn_relu.3} parent=5 // pred_fallthru
      _
  $region6: #{conv_bn_relu.3} parent=0 // loop_footer
    %s12 = sadd.s32 1, %s8
  $region7: #{conv_bn_relu.3} parent=0 // loop_footer_branch
    %7 = sbr.rel target = $region3
  $region8: #{conv_bn_relu.3} parent=0 // loop_exit
    _

// kernel: conv_bn_relu.2
$region0: #{conv_bn_relu.2}
  #allocation0 [shape = 'u32[]', space=smem, size = 0x4, offset = 0x4, fixed_abs, tag = 'smem constant byte address 0x4 - core index']
  #allocation1 [shape = 'u32[72,128]{1,0:T(1,128)}', space=vmem, size = 0x9000, scoped, tag = 'internal scratch']
  %s0 = inlined_call_operand.vmem [shape: bf16[512,128], index: 0, kind: input, shape index: {}]
  %s1 = inlined_call_operand.vmem [shape: bf16[128,128], index: 1, kind: input, shape index: {}]
  %s2 = inlined_call_operand.vmem [shape: bf16[512,128], index: 2, kind: output, shape index: {0}]
  %s3 = inlined_call_operand.vmem [shape: f32[2,2,128], index: 3, kind: output, shape index: {1}]
  %4 = xla_tuple %s2, %s3
  %s5 = sld [smem:[#allocation0]]
  $region49: #{conv_bn_relu.2} parent=0
    _
  %s7 = ssub.s32 1, %s5
  %s8 = scalar_select 0, %s7, %s5
  loop: start=0, step=1, limit=4
  $region2: #{conv_bn_relu.2} parent=0 // loop_pre_header
    _
  $region3: #{conv_bn_relu.2} parent=0 // loop_header
    %s10 = sphi 0, %s14
    %p11 = scmp.ge.s32.totalorder %s10, 4
    %s20 = sphi 0, %s22
    %s23 = sphi 0, %s20
    %s24 = sphi 0, %s23
    %s40 = sphi 0, %s24
    %s44 = sphi 0, %s44
    %s46 = sphi 0, %s44
    %s47 = sphi 0, %s46
    %s61 = sphi 0, %s47
    %s67 = sphi 0, %s69
    %s70 = sphi 0, %s67
    %s71 = sphi 0, %s70
    %s87 = sphi 0, %s71
    %s93 = sphi 0, %s95
    %s96 = sphi 0, %s93
    %s97 = sphi 0, %s96
    %s113 = sphi 0, %s97
  $region4: #{conv_bn_relu.2} parent=0 // loop_header_branch
    %13 = sbr.rel (%p11) target = $region8
  $region5: #{conv_bn_relu.2} parent=0 // loop_body
    %s15 = ssub.s32 %s10, 1
    %s16 = ssub.s32 %s10, 2
    %s17 = sadd.s32 %s10, 1
    %s18 = ssub.s32 %s10, %s17
    %p19 = scmp.eq.s32.totalorder %s18, 0
    %s21 = sadd.s32 %s20, 1
    %s22 = scalar_select %p19, %s20, %s21
    %p25 = pneg %p19
    %p26 = scmp.eq.s32.totalorder %s10, 1
    %p27 = por %p25, %p26
    %p28 = scmp.ne.s32.totalorder %s20, %s23
    %p29 = scmp.eq.s32.totalorder %s10, 0
    %p30 = por %p28, %p29
    %p31 = scmp.ne.s32.totalorder %s20, %s23
    %p32 = scmp.eq.s32.totalorder %s15, 1
    %p33 = por %p31, %p32
    %p34 = scmp.ne.s32.totalorder %s23, %s24
    %p35 = scmp.eq.s32.totalorder %s15, 0
    %p36 = por %p34, %p35
    %p37 = scmp.ne.s32.totalorder %s23, %s24
    %p38 = scmp.eq.s32.totalorder %s16, 1
    %p39 = por %p37, %p38
    %p41 = scmp.ne.s32.totalorder %s24, %s40
    %p42 = scmp.eq.s32.totalorder %s16, 0
    %p43 = por %p41, %p42
    %s45 = sadd.s32 %s44, 1
    %p48 = scmp.eq.s32.totalorder %s10, 1
    %p49 = scmp.ne.s32.totalorder %s44, %s46
    %p50 = scmp.eq.s32.totalorder %s10, 0
    %p51 = por %p49, %p50
    %p52 = scmp.ne.s32.totalorder %s44, %s46
    %p53 = scmp.eq.s32.totalorder %s15, 1
    %p54 = por %p52, %p53
    %p55 = scmp.ne.s32.totalorder %s46, %s47
    %p56 = scmp.eq.s32.totalorder %s15, 0
    %p57 = por %p55, %p56
    %p58 = scmp.ne.s32.totalorder %s46, %s47
    %p59 = scmp.eq.s32.totalorder %s16, 1
    %p60 = por %p58, %p59
    %p62 = scmp.ne.s32.totalorder %s47, %s61
    %p63 = scmp.eq.s32.totalorder %s16, 0
    %p64 = por %p62, %p63
    %s65 = ssub.s32 %s10, %s17
    %p66 = scmp.eq.s32.totalorder %s65, 0
    %s68 = sadd.s32 %s67, 1
    %s69 = scalar_select %p66, %s67, %s68
    %p72 = pneg %p66
    %p73 = scmp.eq.s32.totalorder %s10, 1
    %p74 = por %p72, %p73
    %p75 = scmp.ne.s32.totalorder %s67, %s70
    %p76 = scmp.eq.s32.totalorder %s10, 0
    %p77 = por %p75, %p76
    %p78 = scmp.ne.s32.totalorder %s67, %s70
    %p79 = scmp.eq.s32.totalorder %s15, 1
    %p80 = por %p78, %p79
    %p81 = scmp.ne.s32.totalorder %s70, %s71
    %p82 = scmp.eq.s32.totalorder %s15, 0
    %p83 = por %p81, %p82
    %p84 = scmp.ne.s32.totalorder %s70, %s71
    %p85 = scmp.eq.s32.totalorder %s16, 1
    %p86 = por %p84, %p85
    %p88 = scmp.ne.s32.totalorder %s71, %s87
    %p89 = scmp.eq.s32.totalorder %s16, 0
    %p90 = por %p88, %p89
    %s91 = ssub.s32 %s10, %s17
    %p92 = scmp.eq.s32.totalorder %s91, 0
    %s94 = sadd.s32 %s93, 1
    %s95 = scalar_select %p92, %s93, %s94
    %p98 = pneg %p92
    %p99 = scmp.eq.s32.totalorder %s10, 1
    %p100 = por %p98, %p99
    %p101 = scmp.ne.s32.totalorder %s93, %s96
    %p102 = scmp.eq.s32.totalorder %s10, 0
    %p103 = por %p101, %p102
    %p104 = scmp.ne.s32.totalorder %s93, %s96
    %p105 = scmp.eq.s32.totalorder %s15, 1
    %p106 = por %p104, %p105
    %p107 = scmp.ne.s32.totalorder %s96, %s97
    %p108 = scmp.eq.s32.totalorder %s15, 0
    %p109 = por %p107, %p108
    %p110 = scmp.ne.s32.totalorder %s96, %s97
    %p111 = scmp.eq.s32.totalorder %s16, 1
    %p112 = por %p110, %p111
    %p114 = scmp.ne.s32.totalorder %s97, %s113
    %p115 = scmp.eq.s32.totalorder %s16, 0
    %p116 = por %p114, %p115
    %p117 = scmp.le.s32.totalorder 1, %s10
    %p118 = scmp.lt.s32.totalorder %s10, 3
    %p119 = pnand %p117, %p118
    %p120 = pneg %p119
    // Predicated region
    $region9: #{conv_bn_relu.2} parent=5 // pred_check
      _
    $region10: #{conv_bn_relu.2} parent=5 // pred_check_branch
      %122 = sbr.rel (%p119) target = $region12
    $region11: #{conv_bn_relu.2} parent=5 // pred_region
      %s123 = ssub.s32 %s10, 1
      // Predicated region
      $region13: #{conv_bn_relu.2} parent=11 // pred_check
        %p124 = pneg %p57
      $region14: #{conv_bn_relu.2} parent=11 // pred_check_branch
        %126 = sbr.rel (%p124) target = $region16
      $region15: #{conv_bn_relu.2} parent=11 // pred_region
        _
      $region16: #{conv_bn_relu.2} parent=11 // pred_fallthru
        _
    $region12: #{conv_bn_relu.2} parent=5 // pred_fallthru
      _
    %p127 = scmp.lt.s32.totalorder %s10, 2
    // Predicated region
    $region17: #{conv_bn_relu.2} parent=5 // pred_check
      %p128 = pneg %p127
    $region18: #{conv_bn_relu.2} parent=5 // pred_check_branch
      %130 = sbr.rel (%p128) target = $region20
    $region19: #{conv_bn_relu.2} parent=5 // pred_region
      // Predicated region
      $region21: #{conv_bn_relu.2} parent=19 // pred_check
        %p131 = pneg %p30
      $region22: #{conv_bn_relu.2} parent=19 // pred_check_branch
        %133 = sbr.rel (%p131) target = $region24
      $region23: #{conv_bn_relu.2} parent=19 // pred_region
        %s134 = smul.u32 32, %s10
        %p135 = scmp.lt.s32.totalorder %s134, 63
        %s136 = scalar_select %p135, %s134, 63
        %s137 = smul.addr %s136, 4
        %s138 = scalar_lea.vmem %s0, %s137
        %s139 = smul.u32 32, %s10
      $region24: #{conv_bn_relu.2} parent=19 // pred_fallthru
        _
    $region20: #{conv_bn_relu.2} parent=5 // pred_fallthru
      _
    %p140 = scmp.le.s32.totalorder 1, %s10
    %p141 = scmp.lt.s32.totalorder %s10, 3
    %p142 = pnand %p140, %p141
    %p143 = pneg %p142
    // Predicated region
    $region25: #{conv_bn_relu.2} parent=5 // pred_check
      _
    $region26: #{conv_bn_relu.2} parent=5 // pred_check_branch
      %145 = sbr.rel (%p142) target = $region28
    $region27: #{conv_bn_relu.2} parent=5 // pred_region
      %s146 = ssub.s32 %s10, 1
      %s147 = smul.u32 32, %s15
      %p148 = scmp.lt.s32.totalorder %s147, 63
      %s149 = scalar_select %p148, %s147, 63
      %s150 = smul.addr %s149, 4
      %s151 = scalar_lea.vmem %s0, %s150
      %p152 = pneg %p36
      %p153 = pneg %p33
      %p154 = pneg %p57
      %p155 = pneg %p54
      %p156 = pneg %p83
      %p157 = pneg %p80
      %s158 = smul.u32 32, %s15
      %p159 = scmp.lt.s32.totalorder %s158, 63
      %s160 = scalar_select %p159, %s158, 63
      %s161 = smul.addr %s160, 4
      %s162 = scalar_lea.vmem %s2, %s161
      %p163 = pneg %p109
      %p164 = pneg %p106
      %p165 = scmp.lt.s32.totalorder %s15, 1
      %s166 = scalar_select %p165, %s15, 1
      %s167 = smul.addr %s166, 2
      %s168 = scalar_lea.vmem %s3, %s167
      %s169 = smul.u32 32, %s15
      %p170 = scmp.lt.s32.totalorder %s169, 63
      %s171 = scalar_select %p170, %s169, 63
      %s172 = smul.addr %s171, 4
      %s173 = scalar_lea.vmem %s0, %s172
      %s174 = smul.u32 32, %s15
      %s175 = smul.u32 32, %s15
      %p176 = scmp.lt.s32.totalorder %s175, 63
      %s177 = scalar_select %p176, %s175, 63
      %s178 = smul.addr %s177, 4
      %s179 = scalar_lea.vmem %s2, %s178
      %s180 = smul.u32 32, %s15
      %p181 = scmp.lt.s32.totalorder %s15, 1
      %s182 = scalar_select %p181, %s15, 1
      %s183 = smul.addr %s182, 2
      %s184 = scalar_lea.vmem %s3, %s183
      %v185 = vld [vmem:[%s173] sm:$0xf]
      %v186 = vld [vmem:[%s173 + $0x4] sm:$0xf]
      %v187 = vld [vmem:[%s173 + $0x8] sm:$0xf]
      %v188 = vld [vmem:[%s173 + $0xc] sm:$0xf]
      %v189 = vld [vmem:[%s173 + $0x10] sm:$0xf]
      %v190 = vld [vmem:[%s173 + $0x14] sm:$0xf]
      %v191 = vld [vmem:[%s173 + $0x18] sm:$0xf]
      %v192 = vld [vmem:[%s173 + $0x1c] sm:$0xf]
      %v193 = vld [vmem:[%s173 + $0x20] sm:$0xf]
      %v194 = vld [vmem:[%s173 + $0x24] sm:$0xf]
      %v195 = vld [vmem:[%s173 + $0x28] sm:$0xf]
      %v196 = vld [vmem:[%s173 + $0x2c] sm:$0xf]
      %v197 = vld [vmem:[%s173 + $0x30] sm:$0xf]
      %v198 = vld [vmem:[%s173 + $0x34] sm:$0xf]
      %v199 = vld [vmem:[%s173 + $0x38] sm:$0xf]
      %v200 = vld [vmem:[%s173 + $0x3c] sm:$0xf]
      %v201 = vld [vmem:[%s173 + $0x40] sm:$0xf]
      %v202 = vld [vmem:[%s173 + $0x44] sm:$0xf]
      %v203 = vld [vmem:[%s173 + $0x48] sm:$0xf]
      %v204 = vld [vmem:[%s173 + $0x4c] sm:$0xf]
      %v205 = vld [vmem:[%s173 + $0x50] sm:$0xf]
      %v206 = vld [vmem:[%s173 + $0x54] sm:$0xf]
      %v207 = vld [vmem:[%s173 + $0x58] sm:$0xf]
      %v208 = vld [vmem:[%s173 + $0x5c] sm:$0xf]
      %v209 = vld [vmem:[%s173 + $0x60] sm:$0xf]
      %v210 = vld [vmem:[%s173 + $0x64] sm:$0xf]
      %v211 = vld [vmem:[%s173 + $0x68] sm:$0xf]
      %v212 = vld [vmem:[%s173 + $0x6c] sm:$0xf]
      %v213 = vld [vmem:[%s173 + $0x70] sm:$0xf]
      %v214 = vld [vmem:[%s173 + $0x74] sm:$0xf]
      %v215 = vld [vmem:[%s173 + $0x78] sm:$0xf]
      %v216 = vld [vmem:[%s173 + $0x7c] sm:$0xf]
      %v217 = vld [vmem:[%s1] sm:$0xf]
      %v218 = vld [vmem:[%s1 + $0x4] sm:$0xf]
      %v219 = vld [vmem:[%s1 + $0x8] sm:$0xf]
      %v220 = vld [vmem:[%s1 + $0xc] sm:$0xf]
      %v221 = vld [vmem:[%s1 + $0x10] sm:$0xf]
      %v222 = vld [vmem:[%s1 + $0x14] sm:$0xf]
      %v223 = vld [vmem:[%s1 + $0x18] sm:$0xf]
      %v224 = vld [vmem:[%s1 + $0x1c] sm:$0xf]
      %v225 = vld [vmem:[%s1 + $0x20] sm:$0xf]
      %v226 = vld [vmem:[%s1 + $0x24] sm:$0xf]
      %v227 = vld [vmem:[%s1 + $0x28] sm:$0xf]
      %v228 = vld [vmem:[%s1 + $0x2c] sm:$0xf]
      %v229 = vld [vmem:[%s1 + $0x30] sm:$0xf]
      %v230 = vld [vmem:[%s1 + $0x34] sm:$0xf]
      %v231 = vld [vmem:[%s1 + $0x38] sm:$0xf]
      %v232 = vld [vmem:[%s1 + $0x3c] sm:$0xf]
      %v265 = vunpack.c.l.b16 %v185
      %v266 = vunpack.c.l.b16 %v186
      %v267 = vunpack.c.l.b16 %v187
      %v268 = vunpack.c.l.b16 %v188
      %v269 = vunpack.c.l.b16 %v189
      %v270 = vunpack.c.l.b16 %v190
      %v271 = vunpack.c.l.b16 %v191
      %v272 = vunpack.c.l.b16 %v192
      %v273 = vunpack.c.l.b16 %v193
      %v274 = vunpack.c.l.b16 %v194
      %v275 = vunpack.c.l.b16 %v195
      %v276 = vunpack.c.l.b16 %v196
      %v277 = vunpack.c.l.b16 %v197
      %v278 = vunpack.c.l.b16 %v198
      %v279 = vunpack.c.l.b16 %v199
      %v280 = vunpack.c.l.b16 %v200
      %v281 = vunpack.c.l.b16 %v201
      %v282 = vunpack.c.l.b16 %v202
      %v283 = vunpack.c.l.b16 %v203
      %v284 = vunpack.c.l.b16 %v204
      %v285 = vunpack.c.l.b16 %v205
      %v286 = vunpack.c.l.b16 %v206
      %v287 = vunpack.c.l.b16 %v207
      %v288 = vunpack.c.l.b16 %v208
      %v289 = vunpack.c.l.b16 %v209
      %v290 = vunpack.c.l.b16 %v210
      %v291 = vunpack.c.l.b16 %v211
      %v292 = vunpack.c.l.b16 %v212
      %v293 = vunpack.c.l.b16 %v213
      %v294 = vunpack.c.l.b16 %v214
      %v295 = vunpack.c.l.b16 %v215
      %v296 = vunpack.c.l.b16 %v216
      %v297 = vpack.c.b16 %v266, %v265
      %v298 = vpack.c.b16 %v268, %v267
      %v299 = vpack.c.b16 %v270, %v269
      %v300 = vpack.c.b16 %v272, %v271
      %v301 = vpack.c.b16 %v274, %v273
      %v302 = vpack.c.b16 %v276, %v275
      %v303 = vpack.c.b16 %v278, %v277
      %v304 = vpack.c.b16 %v280, %v279
      %v305 = vpack.c.b16 %v282, %v281
      %v306 = vpack.c.b16 %v284, %v283
      %v307 = vpack.c.b16 %v286, %v285
      %v308 = vpack.c.b16 %v288, %v287
      %v309 = vpack.c.b16 %v290, %v289
      %v310 = vpack.c.b16 %v292, %v291
      %v311 = vpack.c.b16 %v294, %v293
      %v312 = vpack.c.b16 %v296, %v295
      %v345 = vunpack.c.l.b16 %v217
      %v346 = vunpack.c.l.b16 %v218
      %v347 = vunpack.c.l.b16 %v219
      %v348 = vunpack.c.l.b16 %v220
      %v349 = vunpack.c.l.b16 %v221
      %v350 = vunpack.c.l.b16 %v222
      %v351 = vunpack.c.l.b16 %v223
      %v352 = vunpack.c.l.b16 %v224
      %v353 = vunpack.c.l.b16 %v225
      %v354 = vunpack.c.l.b16 %v226
      %v355 = vunpack.c.l.b16 %v227
      %v356 = vunpack.c.l.b16 %v228
      %v357 = vunpack.c.l.b16 %v229
      %v358 = vunpack.c.l.b16 %v230
      %v359 = vunpack.c.l.b16 %v231
      %v360 = vunpack.c.l.b16 %v232
      %v361 = vpack.c.b16 %v346, %v345
      %v362 = vpack.c.b16 %v348, %v347
      %v363 = vpack.c.b16 %v350, %v349
      %v364 = vpack.c.b16 %v352, %v351
      %v365 = vpack.c.b16 %v354, %v353
      %v366 = vpack.c.b16 %v356, %v355
      %v367 = vpack.c.b16 %v358, %v357
      %v368 = vpack.c.b16 %v360, %v359
      %377 = vmatpush.bf16.msra.mxu0 %v368
      %378 = vmatpush.bf16.msra.mxu0 %v367
      %379 = vmatpush.bf16.msra.mxu0 %v366
      %380 = vmatpush.bf16.msra.mxu0 %v365
      %381 = vmatpush.bf16.msra.mxu0 %v364
      %382 = vmatpush.bf16.msra.mxu0 %v363
      %383 = vmatpush.bf16.msra.mxu0 %v362
      %384 = vmatpush.bf16.msra.mxu0 %v361
      %385 = vmatmul.bf16.gmra.mxu0 %v297
      %v386 = vpop.f32.mrf.mxu0
      %v387 = vadd.f32 0.0, %v386
      %v388 = vpop.f32.mrf.mxu0
      %v389 = vadd.f32 0.0, %v388
      %390 = vmatmul.bf16.gmra.mxu0 %v298
      %v391 = vpop.f32.mrf.mxu0
      %v392 = vadd.f32 0.0, %v391
      %v393 = vpop.f32.mrf.mxu0
      %v394 = vadd.f32 0.0, %v393
      %395 = vmatmul.bf16.gmra.mxu0 %v299
      %v396 = vpop.f32.mrf.mxu0
      %v397 = vadd.f32 0.0, %v396
      %v398 = vpop.f32.mrf.mxu0
      %v399 = vadd.f32 0.0, %v398
      %400 = vmatmul.bf16.gmra.mxu0 %v300
      %v401 = vpop.f32.mrf.mxu0
      %v402 = vadd.f32 0.0, %v401
      %v403 = vpop.f32.mrf.mxu0
      %v404 = vadd.f32 0.0, %v403
      %405 = vmatmul.bf16.gmra.mxu0 %v301
      %v406 = vpop.f32.mrf.mxu0
      %v407 = vadd.f32 0.0, %v406
      %v408 = vpop.f32.mrf.mxu0
      %v409 = vadd.f32 0.0, %v408
      %410 = vmatmul.bf16.gmra.mxu0 %v302
      %v411 = vpop.f32.mrf.mxu0
      %v412 = vadd.f32 0.0, %v411
      %v413 = vpop.f32.mrf.mxu0
      %v414 = vadd.f32 0.0, %v413
      %415 = vmatmul.bf16.gmra.mxu0 %v303
      %v416 = vpop.f32.mrf.mxu0
      %v417 = vadd.f32 0.0, %v416
      %v418 = vpop.f32.mrf.mxu0
      %v419 = vadd.f32 0.0, %v418
      %420 = vmatmul.bf16.gmra.mxu0 %v304
      %v421 = vpop.f32.mrf.mxu0
      %v422 = vadd.f32 0.0, %v421
      %v423 = vpop.f32.mrf.mxu0
      %v424 = vadd.f32 0.0, %v423
      %425 = vmatmul.bf16.gmra.mxu0 %v305
      %v426 = vpop.f32.mrf.mxu0
      %v427 = vadd.f32 0.0, %v426
      %v428 = vpop.f32.mrf.mxu0
      %v429 = vadd.f32 0.0, %v428
      %430 = vmatmul.bf16.gmra.mxu0 %v306
      %v431 = vpop.f32.mrf.mxu0
      %v432 = vadd.f32 0.0, %v431
      %v433 = vpop.f32.mrf.mxu0
      %v434 = vadd.f32 0.0, %v433
      %435 = vmatmul.bf16.gmra.mxu0 %v307
      %v436 = vpop.f32.mrf.mxu0
      %v437 = vadd.f32 0.0, %v436
      %v438 = vpop.f32.mrf.mxu0
      %v439 = vadd.f32 0.0, %v438
      %440 = vmatmul.bf16.gmra.mxu0 %v308
      %v441 = vpop.f32.mrf.mxu0
      %v442 = vadd.f32 0.0, %v441
      %v443 = vpop.f32.mrf.mxu0
      %v444 = vadd.f32 0.0, %v443
      %445 = vmatmul.bf16.gmra.mxu0 %v309
      %v446 = vpop.f32.mrf.mxu0
      %v447 = vadd.f32 0.0, %v446
      %v448 = vpop.f32.mrf.mxu0
      %v449 = vadd.f32 0.0, %v448
      %450 = vmatmul.bf16.gmra.mxu0 %v310
      %v451 = vpop.f32.mrf.mxu0
      %v452 = vadd.f32 0.0, %v451
      %v453 = vpop.f32.mrf.mxu0
      %v454 = vadd.f32 0.0, %v453
      %455 = vmatmul.bf16.gmra.mxu0 %v311
      %v456 = vpop.f32.mrf.mxu0
      %v457 = vadd.f32 0.0, %v456
      %v458 = vpop.f32.mrf.mxu0
      %v459 = vadd.f32 0.0, %v458
      %460 = vmatmul.bf16.gmra.mxu0 %v312
      %v461 = vpop.f32.mrf.mxu0
      %v462 = vadd.f32 0.0, %v461
      %v463 = vpop.f32.mrf.mxu0
      %v464 = vadd.f32 0.0, %v463
      %465 = vdwg.mxu0
      %v466 = vadd.f32 %v387, %v389
      %v467 = vadd.f32 %v466, %v392
      %v468 = vadd.f32 %v467, %v394
      %v469 = vadd.f32 %v468, %v397
      %v470 = vadd.f32 %v469, %v399
      %v471 = vadd.f32 %v470, %v402
      %v472 = vadd.f32 %v471, %v404
      %v473 = vadd.f32 %v472, %v407
      %v474 = vadd.f32 %v473, %v409
      %v475 = vadd.f32 %v474, %v412
      %v476 = vadd.f32 %v475, %v414
      %v477 = vadd.f32 %v476, %v417
      %v478 = vadd.f32 %v477, %v419
      %v479 = vadd.f32 %v478, %v422
      %v480 = vadd.f32 %v479, %v424
      %v481 = vadd.f32 %v480, %v427
      %v482 = vadd.f32 %v481, %v429
      %v483 = vadd.f32 %v482, %v432
      %v484 = vadd.f32 %v483, %v434
      %v485 = vadd.f32 %v484, %v437
      %v486 = vadd.f32 %v485, %v439
      %v487 = vadd.f32 %v486, %v442
      %v488 = vadd.f32 %v487, %v444
      %v489 = vadd.f32 %v488, %v447
      %v490 = vadd.f32 %v489, %v449
      %v491 = vadd.f32 %v490, %v452
      %v492 = vadd.f32 %v491, %v454
      %v493 = vadd.f32 %v492, %v457
      %v494 = vadd.f32 %v493, %v459
      %v495 = vadd.f32 %v494, %v462
      %v496 = vadd.f32 %v495, %v464
      %v497 = vrot.slane %v496, 4
      %v498 = vadd.f32 %v496, %v497
      %v499 = vrot.slane %v498, 2
      %v500 = vadd.f32 %v498, %v499
      %v501 = vrot.slane %v500, 1
      %v502 = vadd.f32 %v500, %v501
      %v503 = vmul.f32 %v387, %v387
      %v504 = vmul.f32 %v389, %v389
      %v505 = vmul.f32 %v392, %v392
      %v506 = vmul.f32 %v394, %v394
      %v507 = vmul.f32 %v397, %v397
      %v508 = vmul.f32 %v399, %v399
      %v509 = vmul.f32 %v402, %v402
      %v510 = vmul.f32 %v404, %v404
      %v511 = vmul.f32 %v407, %v407
      %v512 = vmul.f32 %v409, %v409
      %v513 = vmul.f32 %v412, %v412
      %v514 = vmul.f32 %v414, %v414
      %v515 = vmul.f32 %v417, %v417
      %v516 = vmul.f32 %v419, %v419
      %v517 = vmul.f32 %v422, %v422
      %v518 = vmul.f32 %v424, %v424
      %v519 = vmul.f32 %v427, %v427
      %v520 = vmul.f32 %v429, %v429
      %v521 = vmul.f32 %v432, %v432
      %v522 = vmul.f32 %v434, %v434
      %v523 = vmul.f32 %v437, %v437
      %v524 = vmul.f32 %v439, %v439
      %v525 = vmul.f32 %v442, %v442
      %v526 = vmul.f32 %v444, %v444
      %v527 = vmul.f32 %v447, %v447
      %v528 = vmul.f32 %v449, %v449
      %v529 = vmul.f32 %v452, %v452
      %v530 = vmul.f32 %v454, %v454
      %v531 = vmul.f32 %v457, %v457
      %v532 = vmul.f32 %v459, %v459
      %v533 = vmul.f32 %v462, %v462
      %v534 = vmul.f32 %v464, %v464
      %v535 = vadd.f32 %v503, %v504
      %v536 = vadd.f32 %v535, %v505
      %v537 = vadd.f32 %v536, %v506
      %v538 = vadd.f32 %v537, %v507
      %v539 = vadd.f32 %v538, %v508
      %v540 = vadd.f32 %v539, %v509
      %v541 = vadd.f32 %v540, %v510
      %v542 = vadd.f32 %v541, %v511
      %v543 = vadd.f32 %v542, %v512
      %v544 = vadd.f32 %v543, %v513
      %v545 = vadd.f32 %v544, %v514
      %v546 = vadd.f32 %v545, %v515
      %v547 = vadd.f32 %v546, %v516
      %v548 = vadd.f32 %v547, %v517
      %v549 = vadd.f32 %v548, %v518
      %v550 = vadd.f32 %v549, %v519
      %v551 = vadd.f32 %v550, %v520
      %v552 = vadd.f32 %v551, %v521
      %v553 = vadd.f32 %v552, %v522
      %v554 = vadd.f32 %v553, %v523
      %v555 = vadd.f32 %v554, %v524
      %v556 = vadd.f32 %v555, %v525
      %v557 = vadd.f32 %v556, %v526
      %v558 = vadd.f32 %v557, %v527
      %v559 = vadd.f32 %v558, %v528
      %v560 = vadd.f32 %v559, %v529
      %v561 = vadd.f32 %v560, %v530
      %v562 = vadd.f32 %v561, %v531
      %v563 = vadd.f32 %v562, %v532
      %v564 = vadd.f32 %v563, %v533
      %v565 = vadd.f32 %v564, %v534
      %v566 = vrot.slane %v565, 4
      %v567 = vadd.f32 %v565, %v566
      %v568 = vrot.slane %v567, 2
      %v569 = vadd.f32 %v567, %v568
      %v570 = vrot.slane %v569, 1
      %v571 = vadd.f32 %v569, %v570
      %vm572 = vcmask 1040384
      %v573 = vsel %vm572, %v502, %v571
      %574 = vst [vmem:[%s184] sm:$0x3] %v573
      %v575 = vpack.c.bf16 %v387, %v387
      %v576 = vpack.c.bf16 %v389, %v389
      %v577 = vpack.c.bf16 %v392, %v392
      %v578 = vpack.c.bf16 %v394, %v394
      %v579 = vpack.c.bf16 %v397, %v397
      %v580 = vpack.c.bf16 %v399, %v399
      %v581 = vpack.c.bf16 %v402, %v402
      %v582 = vpack.c.bf16 %v404, %v404
      %v583 = vpack.c.bf16 %v407, %v407
      %v584 = vpack.c.bf16 %v409, %v409
      %v585 = vpack.c.bf16 %v412, %v412
      %v586 = vpack.c.bf16 %v414, %v414
      %v587 = vpack.c.bf16 %v417, %v417
      %v588 = vpack.c.bf16 %v419, %v419
      %v589 = vpack.c.bf16 %v422, %v422
      %v590 = vpack.c.bf16 %v424, %v424
      %v591 = vpack.c.bf16 %v427, %v427
      %v592 = vpack.c.bf16 %v429, %v429
      %v593 = vpack.c.bf16 %v432, %v432
      %v594 = vpack.c.bf16 %v434, %v434
      %v595 = vpack.c.bf16 %v437, %v437
      %v596 = vpack.c.bf16 %v439, %v439
      %v597 = vpack.c.bf16 %v442, %v442
      %v598 = vpack.c.bf16 %v444, %v444
      %v599 = vpack.c.bf16 %v447, %v447
      %v600 = vpack.c.bf16 %v449, %v449
      %v601 = vpack.c.bf16 %v452, %v452
      %v602 = vpack.c.bf16 %v454, %v454
      %v603 = vpack.c.bf16 %v457, %v457
      %v604 = vpack.c.bf16 %v459, %v459
      %v605 = vpack.c.bf16 %v462, %v462
      %v606 = vpack.c.bf16 %v464, %v464
      %607 = vst [vmem:[%s179] sm:$0xf] %v575
      %608 = vst [vmem:[%s179 + $0x4] sm:$0xf] %v576
      %609 = vst [vmem:[%s179 + $0x8] sm:$0xf] %v577
      %610 = vst [vmem:[%s179 + $0xc] sm:$0xf] %v578
      %611 = vst [vmem:[%s179 + $0x10] sm:$0xf] %v579
      %612 = vst [vmem:[%s179 + $0x14] sm:$0xf] %v580
      %613 = vst [vmem:[%s179 + $0x18] sm:$0xf] %v581
      %614 = vst [vmem:[%s179 + $0x1c] sm:$0xf] %v582
      %615 = vst [vmem:[%s179 + $0x20] sm:$0xf] %v583
      %616 = vst [vmem:[%s179 + $0x24] sm:$0xf] %v584
      %617 = vst [vmem:[%s179 + $0x28] sm:$0xf] %v585
      %618 = vst [vmem:[%s179 + $0x2c] sm:$0xf] %v586
      %619 = vst [vmem:[%s179 + $0x30] sm:$0xf] %v587
      %620 = vst [vmem:[%s179 + $0x34] sm:$0xf] %v588
      %621 = vst [vmem:[%s179 + $0x38] sm:$0xf] %v589
      %622 = vst [vmem:[%s179 + $0x3c] sm:$0xf] %v590
      %623 = vst [vmem:[%s179 + $0x40] sm:$0xf] %v591
      %624 = vst [vmem:[%s179 + $0x44] sm:$0xf] %v592
      %625 = vst [vmem:[%s179 + $0x48] sm:$0xf] %v593
      %626 = vst [vmem:[%s179 + $0x4c] sm:$0xf] %v594
      %627 = vst [vmem:[%s179 + $0x50] sm:$0xf] %v595
      %628 = vst [vmem:[%s179 + $0x54] sm:$0xf] %v596
      %629 = vst [vmem:[%s179 + $0x58] sm:$0xf] %v597
      %630 = vst [vmem:[%s179 + $0x5c] sm:$0xf] %v598
      %631 = vst [vmem:[%s179 + $0x60] sm:$0xf] %v599
      %632 = vst [vmem:[%s179 + $0x64] sm:$0xf] %v600
      %633 = vst [vmem:[%s179 + $0x68] sm:$0xf] %v601
      %634 = vst [vmem:[%s179 + $0x6c] sm:$0xf] %v602
      %635 = vst [vmem:[%s179 + $0x70] sm:$0xf] %v603
      %636 = vst [vmem:[%s179 + $0x74] sm:$0xf] %v604
      %637 = vst [vmem:[%s179 + $0x78] sm:$0xf] %v605
      %638 = vst [vmem:[%s179 + $0x7c] sm:$0xf] %v606
      %s639 = smul.u32 32, %s15
      %p640 = scmp.lt.s32.totalorder %s639, 63
      %s641 = scalar_select %p640, %s639, 63
      %s642 = smul.addr %s641, 4
      %s643 = scalar_lea.vmem %s2, %s642
      %p644 = scmp.lt.s32.totalorder %s15, 1
      %s645 = scalar_select %p644, %s15, 1
      %s646 = smul.addr %s645, 2
      %s647 = scalar_lea.vmem %s3, %s646
      // Predicated region
      $region29: #{conv_bn_relu.2} parent=27 // pred_check
        %p648 = pneg %p80
      $region30: #{conv_bn_relu.2} parent=27 // pred_check_branch
        %650 = sbr.rel (%p648) target = $region32
      $region31: #{conv_bn_relu.2} parent=27 // pred_region
        %s651 = smul.u32 32, %s15
      $region32: #{conv_bn_relu.2} parent=27 // pred_fallthru
        _
      // Predicated region
      $region33: #{conv_bn_relu.2} parent=27 // pred_check
        %p652 = pneg %p106
      $region34: #{conv_bn_relu.2} parent=27 // pred_check_branch
        %654 = sbr.rel (%p652) target = $region36
      $region35: #{conv_bn_relu.2} parent=27 // pred_region
        _
      $region36: #{conv_bn_relu.2} parent=27 // pred_fallthru
        _
    $region28: #{conv_bn_relu.2} parent=5 // pred_fallthru
      _
    %p655 = scmp.le.s32.totalorder 2, %s10
    // Predicated region
    $region37: #{conv_bn_relu.2} parent=5 // pred_check
      %p656 = pneg %p655
    $region38: #{conv_bn_relu.2} parent=5 // pred_check_branch
      %658 = sbr.rel (%p656) target = $region40
    $region39: #{conv_bn_relu.2} parent=5 // pred_region
      %s659 = ssub.s32 %s10, 2
      // Predicated region
      $region41: #{conv_bn_relu.2} parent=39 // pred_check
        %p660 = pneg %p86
      $region42: #{conv_bn_relu.2} parent=39 // pred_check_branch
        %662 = sbr.rel (%p660) target = $region44
      $region43: #{conv_bn_relu.2} parent=39 // pred_region
        %s663 = smul.u32 32, %s16
        %p664 = scmp.lt.s32.totalorder %s663, 63
        %s665 = scalar_select %p664, %s663, 63
        %s666 = smul.addr %s665, 4
        %s667 = scalar_lea.vmem %s2, %s666
      $region44: #{conv_bn_relu.2} parent=39 // pred_fallthru
        _
      // Predicated region
      $region45: #{conv_bn_relu.2} parent=39 // pred_check
        %p668 = pneg %p112
      $region46: #{conv_bn_relu.2} parent=39 // pred_check_branch
        %670 = sbr.rel (%p668) target = $region48
      $region47: #{conv_bn_relu.2} parent=39 // pred_region
        %p671 = scmp.lt.s32.totalorder %s16, 1
        %s672 = scalar_select %p671, %s16, 1
        %s673 = smul.addr %s672, 2
        %s674 = scalar_lea.vmem %s3, %s673
      $region48: #{conv_bn_relu.2} parent=39 // pred_fallthru
        _
    $region40: #{conv_bn_relu.2} parent=5 // pred_fallthru
      _
  $region6: #{conv_bn_relu.2} parent=0 // loop_footer
    %s14 = sadd.s32 1, %s10
  $region7: #{conv_bn_relu.2} parent=0 // loop_footer_branch
    %9 = sbr.rel target = $region3
  $region8: #{conv_bn_relu.2} parent=0 // loop_exit
    _

</llo_original>
